<compile_context>
chip_gen: v7x
topology: tpu7x:2x2x1
jax: 0.10.0
libtpu: 0.0.40
codegen_flags: <defaults>
</compile_context>

<pallas_src>
import functools
import math

import jax
import jax.numpy as jnp
from jax.experimental import pallas as pl
from jax.experimental.pallas import tpu as pltpu


# --------------------------- Kernel 1: fused QKV projection ------------------


def qkv_projection_kernel(x_ref, wqkv_ref, bqkv_ref, q_ref, k_ref, v_ref, *,
                          num_heads, head_dim):
    """One token tile: x @ Wqkv + b -> q, k, v in head-major (H, TM, hd) bf16."""
    D = num_heads * head_dim
    x = x_ref[0]                                              # (TM, D) bf16
    tm = x.shape[0]

    # bf16 operands, f32 accumulation on the MXU; bias added in f32.
    qkv = jnp.dot(x, wqkv_ref[...], preferred_element_type=jnp.float32)
    qkv = qkv + bqkv_ref[...]                                 # (TM, 3D) f32

    # Split into q/k/v and relayout to head-major ONCE per token (instead of
    # once per query tile inside the attention kernel).
    for i, ref in enumerate((q_ref, k_ref, v_ref)):
        part = qkv[:, i * D:(i + 1) * D]                      # (TM, D) f32
        part = jnp.transpose(part.reshape(tm, num_heads, head_dim), (1, 0, 2))
        ref[0] = part.astype(ref.dtype)                       # (H, TM, hd)


# ------------------ Kernel 2: attention + fused output projection ------------


def attention_kernel(q_ref, k_ref, v_ref, wout_ref, bout_ref, o_ref, acc_ref, *,
                     num_groups):
    # q_ref:    (1, G, TQ, hd)  query tile, head group g           (bf16)
    # k_ref:    (1, G, T,  hd)  full-length keys, head group g     (bf16)
    # v_ref:    (1, G, T,  hd)  full-length values, head group g   (bf16)
    # wout_ref: (G, hd, D)      head-group slice of Wout           (bf16)
    # bout_ref: (1, D)          output bias                        (f32)
    # o_ref:    (1, TQ, D)      output tile (same block across the group axis)
    # acc_ref:  (TQ, D) f32     per-head-group partial accumulator (VMEM)
    hg = pl.program_id(2)

    q = q_ref[0]                  # (G, TQ, hd)
    k = k_ref[0]                  # (G, T,  hd)
    v = v_ref[0]                  # (G, T,  hd)

    # Head-batched QK^T; 1/sqrt(hd) already folded into the Q projection.
    s = jnp.einsum("gqd,gkd->gqk", q, k,
                   preferred_element_type=jnp.float32)        # (G, TQ, T)

    # Numerically-stable softmax; normalisation deferred past the PV matmul.
    m = jnp.max(s, axis=-1, keepdims=True)
    p = jnp.exp(s - m)                                        # (G, TQ, T)
    denom = jnp.sum(p, axis=-1, keepdims=True)                # (G, TQ, 1)

    ctx = jnp.einsum("gqk,gkd->gqd", p.astype(q.dtype), v,
                     preferred_element_type=jnp.float32)      # (G, TQ, hd)
    ctx = (ctx * pl.reciprocal(denom, approx=True)).astype(q.dtype)  # EUP slot

    # Output projection folded over heads: per-head (TQ,hd)@(hd,D) partials
    # accumulated in f32 -> no (TQ, H*hd) relayout / lane concat.
    num_g = ctx.shape[0]
    partial = jnp.dot(ctx[0], wout_ref[0], preferred_element_type=jnp.float32)
    for g in range(1, num_g):
        partial = partial + jnp.dot(ctx[g], wout_ref[g],
                                    preferred_element_type=jnp.float32)

    @pl.when(hg == 0)
    def _():
        acc_ref[...] = jnp.zeros_like(acc_ref)

    acc_ref[...] += partial

    @pl.when(hg == num_groups - 1)
    def _():
        o_ref[0] = (acc_ref[...] + bout_ref[...]).astype(o_ref.dtype)


# ---------------------------------- wrapper -----------------------------------


def _pick_head_group(num_heads, tq, t, score_budget_bytes=16 * 2**20):
    """Largest divisor of num_heads whose f32 score+prob block fits the budget."""
    best = 1
    for g in range(1, num_heads + 1):
        if num_heads % g == 0 and 2 * g * tq * t * 4 <= score_budget_bytes:
            best = g
    return best


def _vmem_limit(est_bytes):
    # Explicit scoped-VMEM request with headroom; capped at 64 MiB so the same
    # request is valid on v7x (64 MiB physical) as well as v5e/v6e.
    return int(min(64 * 2**20, max(32 * 2**20, int(est_bytes * 1.25))))


def multi_head_self_attention(x, wqkv, bqkv, wout, bout, *, num_heads,
                              q_tile=128, proj_tile=256,
                              compute_dtype=jnp.bfloat16):
    """Forward pass of MultiHeadSelfAttention (mask=None path).

    x: (B, T, D); wqkv: (D, 3D); bqkv: (3D,); wout: (D, D); bout: (D,)
    """
    B, T, D = x.shape
    assert D % num_heads == 0
    H = num_heads
    hd = D // H
    scale = 1.0 / math.sqrt(hd)

    # ---- wrapper-side parameter prep (done once, in f32, then cast to bf16) --
    wqkv_s = wqkv.at[:, :D].multiply(scale).astype(compute_dtype)   # scale->Wq
    bqkv_s = bqkv.at[:D].multiply(scale).reshape(1, 3 * D).astype(jnp.float32)
    wout3 = wout.reshape(H, hd, D).astype(compute_dtype)            # head-major
    bout2 = bout.reshape(1, D).astype(jnp.float32)
    x_c = x.astype(compute_dtype)

    # ---------------------------- QKV projection -----------------------------
    TM = min(proj_tile, T)
    n_t = pl.cdiv(T, TM)
    proj_est = (2 * (TM * D * 2 + D * 3 * D * 2 + 3 * D * 4)    # inputs x2 buf
                + 2 * 3 * TM * D * 2                             # outputs x2 buf
                + 2 * TM * 3 * D * 4)                            # f32 transients

    proj = pl.pallas_call(
        functools.partial(qkv_projection_kernel, num_heads=H, head_dim=hd),
        out_shape=(jax.ShapeDtypeStruct((B, H, T, hd), compute_dtype),
                   jax.ShapeDtypeStruct((B, H, T, hd), compute_dtype),
                   jax.ShapeDtypeStruct((B, H, T, hd), compute_dtype)),
        grid_spec=pltpu.PrefetchScalarGridSpec(
            num_scalar_prefetch=0,
            grid=(B, n_t),
            in_specs=[
                pl.BlockSpec((1, TM, D), lambda b, ti: (b, ti, 0)),      # x
                pl.BlockSpec((D, 3 * D), lambda b, ti: (0, 0)),          # Wqkv
                pl.BlockSpec((1, 3 * D), lambda b, ti: (0, 0)),          # bqkv
            ],
            out_specs=[
                pl.BlockSpec((1, H, TM, hd), lambda b, ti: (b, 0, ti, 0)),  # q
                pl.BlockSpec((1, H, TM, hd), lambda b, ti: (b, 0, ti, 0)),  # k
                pl.BlockSpec((1, H, TM, hd), lambda b, ti: (b, 0, ti, 0)),  # v
            ],
        ),
        compiler_params=pltpu.CompilerParams(
            dimension_semantics=("parallel", "parallel"),
            vmem_limit_bytes=_vmem_limit(proj_est)),
    )(x_c, wqkv_s, bqkv_s)
    q, k, v = proj

    # ------------------------ attention + out projection ----------------------
    TQ = min(q_tile, T)
    n_q = pl.cdiv(T, TQ)
    G = _pick_head_group(H, TQ, T)        # heads per grid step (divides H)
    n_g = H // G

    attn_est = (2 * (G * TQ * hd * 2 + 2 * G * T * hd * 2        # q,k,v x2 buf
                     + G * hd * D * 2 + D * 4)                   # wout, bout
                + 2 * TQ * D * x.dtype.itemsize                  # out x2 buf
                + TQ * D * 4                                     # acc scratch
                + 2 * G * TQ * T * 4                             # s, p (f32)
                + G * TQ * hd * 4 + TQ * D * 4)                  # ctx, partial

    out = pl.pallas_call(
        functools.partial(attention_kernel, num_groups=n_g),
        out_shape=jax.ShapeDtypeStruct((B, T, D), x.dtype),
        grid_spec=pltpu.PrefetchScalarGridSpec(
            num_scalar_prefetch=0,
            grid=(B, n_q, n_g),
            in_specs=[
                pl.BlockSpec((1, G, TQ, hd), lambda b, qi, g: (b, g, qi, 0)),
                pl.BlockSpec((1, G, T, hd), lambda b, qi, g: (b, g, 0, 0)),
                pl.BlockSpec((1, G, T, hd), lambda b, qi, g: (b, g, 0, 0)),
                pl.BlockSpec((G, hd, D), lambda b, qi, g: (g, 0, 0)),     # Wout
                pl.BlockSpec((1, D), lambda b, qi, g: (0, 0)),            # bout
            ],
            out_specs=pl.BlockSpec((1, TQ, D), lambda b, qi, g: (b, qi, 0)),
            scratch_shapes=[pltpu.VMEM((TQ, D), jnp.float32)],
        ),
        # (B, qi) write disjoint output blocks -> parallel (feeds both v7x TCs
        # even at B=1); the head-group axis is a reduction -> arbitrary.
        compiler_params=pltpu.CompilerParams(
            dimension_semantics=("parallel", "parallel", "arbitrary"),
            vmem_limit_bytes=_vmem_limit(attn_est)),
    )(q, k, v, wout3, bout2)
    return out


def mhsa_reference(x, wqkv, bqkv, wout, bout, *, num_heads):
    """Pure-JAX f32 reference mirroring the PyTorch forward exactly."""
    B, T, D = x.shape
    head_dim = D // num_heads
    qkv = jnp.einsum("btd,de->bte", x, wqkv) + bqkv          # (B, T, 3D)
    qkv = qkv.reshape(B, T, 3, num_heads, head_dim)
    qkv = jnp.transpose(qkv, (2, 0, 3, 1, 4))                # (3, B, H, T, hd)
    q, k, v = qkv[0], qkv[1], qkv[2]
    scores = jnp.einsum("bhtd,bhsd->bhts", q, k) / math.sqrt(head_dim)
    attn = jax.nn.softmax(scores, axis=-1)
    out = jnp.einsum("bhts,bhsd->bhtd", attn, v)             # (B, H, T, hd)
    out = jnp.transpose(out, (0, 2, 1, 3)).reshape(B, T, D)
    return jnp.einsum("btd,de->bte", out, wout) + bout


if __name__ == "__main__":
    # Small shapes consistent with the module: B=2, T=8, D=32, heads=4
    B, T, D, H = 2, 8, 32, 4

    key = jax.random.PRNGKey(0)
    kx, kw1, kb1, kw2, kb2 = jax.random.split(key, 5)

    lim1 = 1.0 / math.sqrt(D)
    wqkv = jax.random.uniform(kw1, (D, 3 * D), jnp.float32, -lim1, lim1)
    bqkv = jax.random.uniform(kb1, (3 * D,), jnp.float32, -lim1, lim1)
    wout = jax.random.uniform(kw2, (D, D), jnp.float32, -lim1, lim1)
    bout = jax.random.uniform(kb2, (D,), jnp.float32, -lim1, lim1)

    x = jax.random.normal(kx, (B, T, D), jnp.float32)

    out = multi_head_self_attention(x, wqkv, bqkv, wout, bout, num_heads=H)
    out = jax.block_until_ready(out)

    ref = mhsa_reference(x, wqkv, bqkv, wout, bout, num_heads=H)
    assert out.shape == (B, T, D)
    # Tolerance relaxed for bf16 MXU operands + approx (EUP) reciprocal.
    assert jnp.allclose(out, ref, atol=2e-2, rtol=2e-2), \
        f"max abs diff {jnp.max(jnp.abs(out - ref))}"

    print("KERNEL_OK")
</pallas_src>

<mosaic_0001>
module attributes {stable_mosaic.version = 11 : i64} {
  func.func @qkv_projection_kernel(%arg0: i32, %arg1: i32, %arg2: memref<1x8x32xbf16, #tpu.memory_space<vmem>>, %arg3: memref<32x96xbf16, #tpu.memory_space<vmem>>, %arg4: memref<1x96xf32, #tpu.memory_space<vmem>>, %arg5: memref<1x4x8x8xbf16, #tpu.memory_space<vmem>>, %arg6: memref<1x4x8x8xbf16, #tpu.memory_space<vmem>>, %arg7: memref<1x4x8x8xbf16, #tpu.memory_space<vmem>>) attributes {dimension_semantics = [#tpu.dimension_semantics<parallel>, #tpu.dimension_semantics<parallel>], iteration_bounds = array<i64: 2, 1>, scalar_prefetch = 0 : i64, scratch_operands = 0 : i64, tpu.core_type = #tpu.core_type<tc>, window_params = [{transform_indices = @transform_0, window_bounds = array<i64: 1, 8, 32>}, {pipeline_mode = #tpu.pipeline_mode<synchronous>, transform_indices = @transform_1, window_bounds = array<i64: 32, 96>}, {pipeline_mode = #tpu.pipeline_mode<synchronous>, transform_indices = @transform_2, window_bounds = array<i64: 1, 96>}, {transform_indices = @transform_3, window_bounds = array<i64: 1, 4, 8, 8>}, {transform_indices = @transform_4, window_bounds = array<i64: 1, 4, 8, 8>}, {transform_indices = @transform_5, window_bounds = array<i64: 1, 4, 8, 8>}]} {
    %c0 = arith.constant 0 : index
    %c0_0 = arith.constant 0 : index
    %c0_1 = arith.constant 0 : index
    %0 = vector.load %arg2[%c0, %c0_0, %c0_1] : memref<1x8x32xbf16, #tpu.memory_space<vmem>>, vector<1x8x32xbf16>
    %1 = vector.shape_cast %0 : vector<1x8x32xbf16> to vector<8x32xbf16>
    %c0_2 = arith.constant 0 : index
    %c0_3 = arith.constant 0 : index
    %2 = vector.load %arg3[%c0_2, %c0_3] : memref<32x96xbf16, #tpu.memory_space<vmem>>, vector<32x96xbf16>
    %cst = arith.constant dense<0.000000e+00> : vector<8x96xf32>
    %3 = tpu.matmul %1, %2, %cst {dimension_numbers = #tpu.dot_dimension_numbers<[1], [0], [0], [1], [0, 0, 1, 1], [], []>} : vector<8x32xbf16>, vector<32x96xbf16>, vector<8x96xf32> -> vector<8x96xf32>
    %c0_4 = arith.constant 0 : index
    %c0_5 = arith.constant 0 : index
    %4 = vector.load %arg4[%c0_4, %c0_5] : memref<1x96xf32, #tpu.memory_space<vmem>>, vector<1x96xf32>
    %5 = vector.broadcast %4 : vector<1x96xf32> to vector<8x96xf32>
    %6 = arith.addf %3, %5 : vector<8x96xf32>
    %7 = vector.extract_strided_slice %6 {offsets = [0, 0], sizes = [8, 32], strides = [1, 1]} : vector<8x96xf32> to vector<8x32xf32>
    %8 = vector.shape_cast %7 : vector<8x32xf32> to vector<8x4x8xf32>
    %9 = tpu.transpose %8, [1, 0, 2] : vector<8x4x8xf32> -> vector<4x8x8xf32>
    %10 = arith.truncf %9 : vector<4x8x8xf32> to vector<4x8x8xbf16>
    %c0_6 = arith.constant 0 : index
    %c0_7 = arith.constant 0 : index
    %c0_8 = arith.constant 0 : index
    %c0_9 = arith.constant 0 : index
    %11 = vector.load %arg5[%c0_6, %c0_7, %c0_8, %c0_9] : memref<1x4x8x8xbf16, #tpu.memory_space<vmem>>, vector<1x4x8x8xbf16>
    %12 = vector.shape_cast %11 : vector<1x4x8x8xbf16> to vector<4x8x8xbf16>
    %13 = vector.shape_cast %10 : vector<4x8x8xbf16> to vector<1x4x8x8xbf16>
    tpu.vector_store %arg5[%c0_6, %c0_7, %c0_8, %c0_9], %13 {strides = array<i32>} : memref<1x4x8x8xbf16, #tpu.memory_space<vmem>>, vector<1x4x8x8xbf16>,
    %14 = vector.extract_strided_slice %6 {offsets = [0, 32], sizes = [8, 32], strides = [1, 1]} : vector<8x96xf32> to vector<8x32xf32>
    %15 = vector.shape_cast %14 : vector<8x32xf32> to vector<8x4x8xf32>
    %16 = tpu.transpose %15, [1, 0, 2] : vector<8x4x8xf32> -> vector<4x8x8xf32>
    %17 = arith.truncf %16 : vector<4x8x8xf32> to vector<4x8x8xbf16>
    %c0_10 = arith.constant 0 : index
    %c0_11 = arith.constant 0 : index
    %c0_12 = arith.constant 0 : index
    %c0_13 = arith.constant 0 : index
    %18 = vector.load %arg6[%c0_10, %c0_11, %c0_12, %c0_13] : memref<1x4x8x8xbf16, #tpu.memory_space<vmem>>, vector<1x4x8x8xbf16>
    %19 = vector.shape_cast %18 : vector<1x4x8x8xbf16> to vector<4x8x8xbf16>
    %20 = vector.shape_cast %17 : vector<4x8x8xbf16> to vector<1x4x8x8xbf16>
    tpu.vector_store %arg6[%c0_10, %c0_11, %c0_12, %c0_13], %20 {strides = array<i32>} : memref<1x4x8x8xbf16, #tpu.memory_space<vmem>>, vector<1x4x8x8xbf16>,
    %21 = vector.extract_strided_slice %6 {offsets = [0, 64], sizes = [8, 32], strides = [1, 1]} : vector<8x96xf32> to vector<8x32xf32>
    %22 = vector.shape_cast %21 : vector<8x32xf32> to vector<8x4x8xf32>
    %23 = tpu.transpose %22, [1, 0, 2] : vector<8x4x8xf32> -> vector<4x8x8xf32>
    %24 = arith.truncf %23 : vector<4x8x8xf32> to vector<4x8x8xbf16>
    %c0_14 = arith.constant 0 : index
    %c0_15 = arith.constant 0 : index
    %c0_16 = arith.constant 0 : index
    %c0_17 = arith.constant 0 : index
    %25 = vector.load %arg7[%c0_14, %c0_15, %c0_16, %c0_17] : memref<1x4x8x8xbf16, #tpu.memory_space<vmem>>, vector<1x4x8x8xbf16>
    %26 = vector.shape_cast %25 : vector<1x4x8x8xbf16> to vector<4x8x8xbf16>
    %27 = vector.shape_cast %24 : vector<4x8x8xbf16> to vector<1x4x8x8xbf16>
    tpu.vector_store %arg7[%c0_14, %c0_15, %c0_16, %c0_17], %27 {strides = array<i32>} : memref<1x4x8x8xbf16, #tpu.memory_space<vmem>>, vector<1x4x8x8xbf16>,
    return
  }
  func.func @transform_0(%arg0: i32, %arg1: i32) -> (i32, i32, i32) {
    %c0_i32 = arith.constant 0 : i32
    %c0_i32_0 = arith.constant 0 : i32
    return %arg0, %arg1, %c0_i32 : i32, i32, i32
  }
  func.func @transform_1(%arg0: i32, %arg1: i32) -> (i32, i32) {
    %c0_i32 = arith.constant 0 : i32
    %c0_i32_0 = arith.constant 0 : i32
    %c0_i32_1 = arith.constant 0 : i32
    return %c0_i32, %c0_i32_0 : i32, i32
  }
  func.func @transform_2(%arg0: i32, %arg1: i32) -> (i32, i32) {
    %c0_i32 = arith.constant 0 : i32
    %c0_i32_0 = arith.constant 0 : i32
    %c0_i32_1 = arith.constant 0 : i32
    return %c0_i32, %c0_i32_0 : i32, i32
  }
  func.func @transform_3(%arg0: i32, %arg1: i32) -> (i32, i32, i32, i32) {
    %c0_i32 = arith.constant 0 : i32
    %c0_i32_0 = arith.constant 0 : i32
    %c0_i32_1 = arith.constant 0 : i32
    return %arg0, %c0_i32, %arg1, %c0_i32_0 : i32, i32, i32, i32
  }
  func.func @transform_4(%arg0: i32, %arg1: i32) -> (i32, i32, i32, i32) {
    %c0_i32 = arith.constant 0 : i32
    %c0_i32_0 = arith.constant 0 : i32
    %c0_i32_1 = arith.constant 0 : i32
    return %arg0, %c0_i32, %arg1, %c0_i32_0 : i32, i32, i32, i32
  }
  func.func @transform_5(%arg0: i32, %arg1: i32) -> (i32, i32, i32, i32) {
    %c0_i32 = arith.constant 0 : i32
    %c0_i32_0 = arith.constant 0 : i32
    %c0_i32_1 = arith.constant 0 : i32
    return %arg0, %c0_i32, %arg1, %c0_i32_0 : i32, i32, i32, i32
  }
}

</mosaic_0001>

<llo_original>
// kernel: tpu_custom_call.1
$region0: #{tpu_custom_call.1}
  #allocation0 [shape = 'u32[]', space=smem, size = 0x4, offset = 0x4, fixed_abs, tag = 'smem constant byte address 0x4 - core index']
  #allocation1 [shape = 'u32[144,128]{1,0:T(1,128)}', space=vmem, size = 0x12000, scoped, tag = 'internal scratch']
  %s0 = inlined_call_operand.hbm [shape: bf16[2,8,32], index: 0, kind: input, shape index: {}]
  %s1 = inlined_call_operand.hbm [shape: bf16[32,96], index: 1, kind: input, shape index: {}]
  %s2 = inlined_call_operand.vmem [shape: f32[1,96], index: 2, kind: input, shape index: {}]
  %s3 = inlined_call_operand.hbm [shape: bf16[2,4,8,8], index: 3, kind: output, shape index: {0}]
  %s4 = inlined_call_operand.hbm [shape: bf16[2,4,8,8], index: 4, kind: output, shape index: {1}]
  %s5 = inlined_call_operand.hbm [shape: bf16[2,4,8,8], index: 5, kind: output, shape index: {2}]
  %6 = xla_tuple %s3, %s4, %s5
  %s7 = sld [smem:[#allocation0]]
  $region69: #{tpu_custom_call.1} parent=0
    _
  %s9 = ssub.s32 1, %s7
  %s10 = scalar_select 0, %s9, %s7
  $region1: #{tpu_custom_call.1} parent=0
    #allocation2 [shape = 'u8[4096]{0}', space=vmem, size = 0x1000, scoped, tag = 'input window, operand 0']
    #allocation3 [shape = 's32[2]{0}', space=sflag, size = 0x8, scoped, tag = 'scoped memory for tpu_custom_call.1']
    #allocation4 [shape = 's32[2]{0}', space=sflag, size = 0x8, scoped, tag = 'scoped memory for tpu_custom_call.1']
    #allocation5 [shape = 'u8[8192]{0}', space=vmem, size = 0x2000, scoped, tag = 'input window, operand 1, single buffered']
    #allocation6 [shape = 's32[1]{0}', space=sflag, size = 0x4, scoped, tag = 'scoped memory for tpu_custom_call.1']
    #allocation7 [shape = 'u8[16384]{0}', space=vmem, size = 0x4000, scoped, tag = 'output window, operand 0']
    #allocation8 [shape = 'u8[16384]{0}', space=vmem, size = 0x4000, scoped, tag = 'output window, operand 1']
    #allocation9 [shape = 's32[2]{0}', space=sflag, size = 0x8, scoped, tag = 'scoped memory for tpu_custom_call.1']
    #allocation10 [shape = 'u8[16384]{0}', space=vmem, size = 0x4000, scoped, tag = 'output window, operand 2']
    %11 = vsyncpa [#allocation3], 0
    %s12 = scalar_lea.sflag [#allocation3], 1
    %13 = vsyncpa %s12, 0
    %14 = vsyncpa [#allocation6], 0
    %15 = vsyncpa [#allocation4], 0
    %s16 = scalar_lea.sflag [#allocation4], 1
    %17 = vsyncpa %s16, 0
    %18 = vsyncpa [#allocation9], 0
    %s19 = scalar_lea.sflag [#allocation9], 1
    %20 = vsyncpa %s19, 0
    loop: start=0, step=1, limit=4
    $region2: #{tpu_custom_call.1} parent=1 // loop_pre_header
      _
    $region3: #{tpu_custom_call.1} parent=1 // loop_header
      %s22 = sphi 0, %s26
      %p23 = scmp.ge.s32.totalorder %s22, 4
      %s29 = sphi 0, %s41
      %s30 = sphi 0, %s37
      %s31 = sphi 0, %s29
      %s32 = sphi 0, %s30
      %s33 = sphi 0, %s31
      %s34 = sphi 0, %s32
      %s46 = sphi 0, %s48
      %s49 = sphi 0, %s46
      %s50 = sphi 0, %s49
      %s66 = sphi 0, %s50
      %s70 = sphi 0, %s70
      %s72 = sphi 0, %s70
      %s73 = sphi 0, %s72
      %s87 = sphi 0, %s73
      %s91 = sphi 0, %s91
      %s93 = sphi 0, %s91
      %s94 = sphi 0, %s93
      %s108 = sphi 0, %s94
      %s116 = sphi 0, %s118
      %s119 = sphi 0, %s116
      %s120 = sphi 0, %s119
      %s136 = sphi 0, %s120
      %s144 = sphi 0, %s146
      %s147 = sphi 0, %s144
      %s148 = sphi 0, %s147
      %s164 = sphi 0, %s148
      %s172 = sphi 0, %s174
      %s175 = sphi 0, %s172
      %s176 = sphi 0, %s175
      %s192 = sphi 0, %s176
    $region4: #{tpu_custom_call.1} parent=1 // loop_header_branch
      %25 = sbr.rel (%p23) target = $region8
    $region5: #{tpu_custom_call.1} parent=1 // loop_body
      %s27 = ssub.s32 %s22, 1
      %s28 = ssub.s32 %s22, 2
      %s35 = sadd.s32 1, %s30
      %p36 = scmp.ge.s32.totalorder %s35, 1
      %s37 = scalar_select %p36, 0, %s35
      %s38 = sadd.s32 1, %s29
      %s39 = scalar_select %p36, %s38, %s29
      %p40 = scmp.ge.s32.totalorder %s39, 2
      %s41 = scalar_select %p40, 0, %s39
      %s42 = ssub.s32 %s29, %s41
      %s43 = ssub.s32 %s30, %s37
      %s44 = sor.u32 %s42, %s43
      %p45 = scmp.eq.s32.totalorder %s44, 0
      %s47 = sadd.s32 %s46, 1
      %s48 = scalar_select %p45, %s46, %s47
      %p51 = pneg %p45
      %p52 = scmp.eq.s32.totalorder %s22, 1
      %p53 = por %p51, %p52
      %p54 = scmp.ne.s32.totalorder %s46, %s49
      %p55 = scmp.eq.s32.totalorder %s22, 0
      %p56 = por %p54, %p55
      %p57 = scmp.ne.s32.totalorder %s46, %s49
      %p58 = scmp.eq.s32.totalorder %s27, 1
      %p59 = por %p57, %p58
      %p60 = scmp.ne.s32.totalorder %s49, %s50
      %p61 = scmp.eq.s32.totalorder %s27, 0
      %p62 = por %p60, %p61
      %p63 = scmp.ne.s32.totalorder %s49, %s50
      %p64 = scmp.eq.s32.totalorder %s28, 1
      %p65 = por %p63, %p64
      %p67 = scmp.ne.s32.totalorder %s50, %s66
      %p68 = scmp.eq.s32.totalorder %s28, 0
      %p69 = por %p67, %p68
      %s71 = sadd.s32 %s70, 1
      %p74 = scmp.eq.s32.totalorder %s22, 1
      %p75 = scmp.ne.s32.totalorder %s70, %s72
      %p76 = scmp.eq.s32.totalorder %s22, 0
      %p77 = por %p75, %p76
      %p78 = scmp.ne.s32.totalorder %s70, %s72
      %p79 = scmp.eq.s32.totalorder %s27, 1
      %p80 = por %p78, %p79
      %p81 = scmp.ne.s32.totalorder %s72, %s73
      %p82 = scmp.eq.s32.totalorder %s27, 0
      %p83 = por %p81, %p82
      %p84 = scmp.ne.s32.totalorder %s72, %s73
      %p85 = scmp.eq.s32.totalorder %s28, 1
      %p86 = por %p84, %p85
      %p88 = scmp.ne.s32.totalorder %s73, %s87
      %p89 = scmp.eq.s32.totalorder %s28, 0
      %p90 = por %p88, %p89
      %s92 = sadd.s32 %s91, 1
      %p95 = scmp.eq.s32.totalorder %s22, 1
      %p96 = scmp.ne.s32.totalorder %s91, %s93
      %p97 = scmp.eq.s32.totalorder %s22, 0
      %p98 = por %p96, %p97
      %p99 = scmp.ne.s32.totalorder %s91, %s93
      %p100 = scmp.eq.s32.totalorder %s27, 1
      %p101 = por %p99, %p100
      %p102 = scmp.ne.s32.totalorder %s93, %s94
      %p103 = scmp.eq.s32.totalorder %s27, 0
      %p104 = por %p102, %p103
      %p105 = scmp.ne.s32.totalorder %s93, %s94
      %p106 = scmp.eq.s32.totalorder %s28, 1
      %p107 = por %p105, %p106
      %p109 = scmp.ne.s32.totalorder %s94, %s108
      %p110 = scmp.eq.s32.totalorder %s28, 0
      %p111 = por %p109, %p110
      %s112 = ssub.s32 %s29, %s41
      %s113 = ssub.s32 %s30, %s37
      %s114 = sor.u32 %s112, %s113
      %p115 = scmp.eq.s32.totalorder %s114, 0
      %s117 = sadd.s32 %s116, 1
      %s118 = scalar_select %p115, %s116, %s117
      %p121 = pneg %p115
      %p122 = scmp.eq.s32.totalorder %s22, 1
      %p123 = por %p121, %p122
      %p124 = scmp.ne.s32.totalorder %s116, %s119
      %p125 = scmp.eq.s32.totalorder %s22, 0
      %p126 = por %p124, %p125
      %p127 = scmp.ne.s32.totalorder %s116, %s119
      %p128 = scmp.eq.s32.totalorder %s27, 1
      %p129 = por %p127, %p128
      %p130 = scmp.ne.s32.totalorder %s119, %s120
      %p131 = scmp.eq.s32.totalorder %s27, 0
      %p132 = por %p130, %p131
      %p133 = scmp.ne.s32.totalorder %s119, %s120
      %p134 = scmp.eq.s32.totalorder %s28, 1
      %p135 = por %p133, %p134
      %p137 = scmp.ne.s32.totalorder %s120, %s136
      %p138 = scmp.eq.s32.totalorder %s28, 0
      %p139 = por %p137, %p138
      %s140 = ssub.s32 %s29, %s41
      %s141 = ssub.s32 %s30, %s37
      %s142 = sor.u32 %s140, %s141
      %p143 = scmp.eq.s32.totalorder %s142, 0
      %s145 = sadd.s32 %s144, 1
      %s146 = scalar_select %p143, %s144, %s145
      %p149 = pneg %p143
      %p150 = scmp.eq.s32.totalorder %s22, 1
      %p151 = por %p149, %p150
      %p152 = scmp.ne.s32.totalorder %s144, %s147
      %p153 = scmp.eq.s32.totalorder %s22, 0
      %p154 = por %p152, %p153
      %p155 = scmp.ne.s32.totalorder %s144, %s147
      %p156 = scmp.eq.s32.totalorder %s27, 1
      %p157 = por %p155, %p156
      %p158 = scmp.ne.s32.totalorder %s147, %s148
      %p159 = scmp.eq.s32.totalorder %s27, 0
      %p160 = por %p158, %p159
      %p161 = scmp.ne.s32.totalorder %s147, %s148
      %p162 = scmp.eq.s32.totalorder %s28, 1
      %p163 = por %p161, %p162
      %p165 = scmp.ne.s32.totalorder %s148, %s164
      %p166 = scmp.eq.s32.totalorder %s28, 0
      %p167 = por %p165, %p166
      %s168 = ssub.s32 %s29, %s41
      %s169 = ssub.s32 %s30, %s37
      %s170 = sor.u32 %s168, %s169
      %p171 = scmp.eq.s32.totalorder %s170, 0
      %s173 = sadd.s32 %s172, 1
      %s174 = scalar_select %p171, %s172, %s173
      %p177 = pneg %p171
      %p178 = scmp.eq.s32.totalorder %s22, 1
      %p179 = por %p177, %p178
      %p180 = scmp.ne.s32.totalorder %s172, %s175
      %p181 = scmp.eq.s32.totalorder %s22, 0
      %p182 = por %p180, %p181
      %p183 = scmp.ne.s32.totalorder %s172, %s175
      %p184 = scmp.eq.s32.totalorder %s27, 1
      %p185 = por %p183, %p184
      %p186 = scmp.ne.s32.totalorder %s175, %s176
      %p187 = scmp.eq.s32.totalorder %s27, 0
      %p188 = por %p186, %p187
      %p189 = scmp.ne.s32.totalorder %s175, %s176
      %p190 = scmp.eq.s32.totalorder %s28, 1
      %p191 = por %p189, %p190
      %p193 = scmp.ne.s32.totalorder %s176, %s192
      %p194 = scmp.eq.s32.totalorder %s28, 0
      %p195 = por %p193, %p194
      %p196 = scmp.le.s32.totalorder 1, %s22
      %p197 = scmp.lt.s32.totalorder %s22, 3
      %p198 = pnand %p196, %p197
      %p199 = pneg %p198
      // Predicated region
      $region9: #{tpu_custom_call.1} parent=5 // pred_check
        _
      $region10: #{tpu_custom_call.1} parent=5 // pred_check_branch
        %201 = sbr.rel (%p198) target = $region12
      $region11: #{tpu_custom_call.1} parent=5 // pred_region
        %s202 = ssub.s32 %s22, 1
        // Predicated region
        $region13: #{tpu_custom_call.1} parent=11 // pred_check
          %p203 = pneg %p83
        $region14: #{tpu_custom_call.1} parent=11 // pred_check_branch
          %205 = sbr.rel (%p203) target = $region16
        $region15: #{tpu_custom_call.1} parent=11 // pred_region
          %s207 = ssub.s32 256, 256
          %208 = vsyncadd [#allocation6], %s207
          %s209 = sshll.u32 [#allocation5], 4
          %s210 = int_to_ptr.vmem [resolvable:$true] %s209
          %215 = dma.hbm_to_vmem [thread:$0]  %s1, 256, %s210, [#allocation6], 64, 64, 4
        $region16: #{tpu_custom_call.1} parent=11 // pred_fallthru
          _
        // Predicated region
        $region17: #{tpu_custom_call.1} parent=11 // pred_check
          %p216 = pneg %p104
        $region18: #{tpu_custom_call.1} parent=11 // pred_check_branch
          %218 = sbr.rel (%p216) target = $region20
        $region19: #{tpu_custom_call.1} parent=11 // pred_region
          _
        $region20: #{tpu_custom_call.1} parent=11 // pred_fallthru
          _
      $region12: #{tpu_custom_call.1} parent=5 // pred_fallthru
        _
      %p219 = scmp.lt.s32.totalorder %s22, 2
      // Predicated region
      $region21: #{tpu_custom_call.1} parent=5 // pred_check
        %p220 = pneg %p219
      $region22: #{tpu_custom_call.1} parent=5 // pred_check_branch
        %222 = sbr.rel (%p220) target = $region24
      $region23: #{tpu_custom_call.1} parent=5 // pred_region
        // Predicated region
        $region25: #{tpu_custom_call.1} parent=23 // pred_check
          %p223 = pneg %p56
        $region26: #{tpu_custom_call.1} parent=23 // pred_check_branch
          %225 = sbr.rel (%p223) target = $region28
        $region27: #{tpu_custom_call.1} parent=23 // pred_region
          %s226 = sand.u32 %s46, 1
          %s227 = scalar_lea.sflag [#allocation3], %s226
          %s228 = sand.u32 %s46, 1
          %s229 = smul.addr %s228, 4
          %s230 = scalar_lea.vmem [#allocation2], %s229
          %s232 = ssub.s32 64, 64
          %233 = vsyncadd %s227, %s232
          %s234 = sadd.s32 %s30, %s29
          %s235 = smul.addr %s234, 64
          %s236 = scalar_lea.hbm %s0, %s235
          %s238 = sshll.u32 %s230, 4
          %s239 = int_to_ptr.vmem [resolvable:$true] %s238
          %241 = dma.hbm_to_vmem [thread:$0]  %s236, 64, %s239, %s227
        $region28: #{tpu_custom_call.1} parent=23 // pred_fallthru
          _
      $region24: #{tpu_custom_call.1} parent=5 // pred_fallthru
        _
      %p242 = scmp.le.s32.totalorder 1, %s22
      %p243 = scmp.lt.s32.totalorder %s22, 3
      %p244 = pnand %p242, %p243
      %p245 = pneg %p244
      // Predicated region
      $region29: #{tpu_custom_call.1} parent=5 // pred_check
        _
      $region30: #{tpu_custom_call.1} parent=5 // pred_check_branch
        %247 = sbr.rel (%p244) target = $region32
      $region31: #{tpu_custom_call.1} parent=5 // pred_region
        %s248 = ssub.s32 %s22, 1
        %s249 = sand.u32 %s49, 1
        %s250 = scalar_lea.sflag [#allocation3], %s249
        %s251 = sand.u32 %s49, 1
        %s252 = smul.addr %s251, 4
        %s253 = scalar_lea.vmem [#allocation2], %s252
        // Predicated region
        $region33: #{tpu_custom_call.1} parent=31 // pred_check
          %p254 = pneg %p62
        $region34: #{tpu_custom_call.1} parent=31 // pred_check_branch
          %256 = sbr.rel (%p254) target = $region36
        $region35: #{tpu_custom_call.1} parent=31 // pred_region
          %257 = dma.done %s250, 64
        $region36: #{tpu_custom_call.1} parent=31 // pred_fallthru
          _
        // Predicated region
        $region37: #{tpu_custom_call.1} parent=31 // pred_check
          %p258 = pneg %p83
        $region38: #{tpu_custom_call.1} parent=31 // pred_check_branch
          %260 = sbr.rel (%p258) target = $region40
        $region39: #{tpu_custom_call.1} parent=31 // pred_region
          %261 = dma.done [#allocation6], 256
        $region40: #{tpu_custom_call.1} parent=31 // pred_fallthru
          _
        %s262 = sand.u32 %s49, 1
        %s263 = scalar_lea.sflag [#allocation3], %s262
        %s264 = sand.u32 %s49, 1
        %s265 = smul.addr %s264, 4
        %s266 = scalar_lea.vmem [#allocation2], %s265
        %p267 = pneg %p62
        %p268 = pneg %p59
        %p269 = pneg %p83
        %p270 = pneg %p80
        %p271 = pneg %p104
        %p272 = pneg %p101
        %p273 = pneg %p132
        %p274 = pneg %p129
        %s275 = sand.u32 %s119, 1
        %s276 = scalar_lea.sflag [#allocation4], %s275
        %s277 = sand.u32 %s119, 1
        %s278 = smul.addr %s277, 16
        %s279 = scalar_lea.vmem [#allocation7], %s278
        %p280 = pneg %p160
        %p281 = pneg %p157
        %s282 = sand.u32 %s27, 1
        %s283 = scalar_lea.sflag [#allocation9], %s282
        %s284 = sand.u32 %s147, 1
        %s285 = smul.addr %s284, 16
        %s286 = scalar_lea.vmem [#allocation8], %s285
        %p287 = pneg %p188
        %p288 = pneg %p185
        %s289 = sand.u32 %s27, 1
        %s290 = scalar_lea.sflag [#allocation9], %s289
        %s291 = sand.u32 %s175, 1
        %s292 = smul.addr %s291, 16
        %s293 = scalar_lea.vmem [#allocation10], %s292
        %v295 = vld [vmem:[%s253] sm:$0xf]
        %v296 = vld [vmem:[#allocation5] sm:$0xf]
        %v297 = vld [vmem:[#allocation5 + $0x4] sm:$0xf]
        %v298 = vld [vmem:[#allocation5 + $0x8] sm:$0xf]
        %v299 = vld [vmem:[#allocation5 + $0xc] sm:$0xf]
        %v300 = vld [vmem:[%s2] sm:$0x1]
        %v302 = vlaneseq
        %v303 = vshrl.u32 %v302, 7
        %v304 = vsub.s32 0, %v303
        %v305 = vrot.slane %v300, %v304
        %v311 = vunpack.c.l.b16 %v296
        %v312 = vunpack.c.l.b16 %v297
        %v313 = vunpack.c.l.b16 %v298
        %v314 = vunpack.c.l.b16 %v299
        %v315 = vpack.c.b16 %v312, %v311
        %v316 = vpack.c.b16 %v314, %v313
        %vm319 = vcmask 261120
        %v321 = vsel %vm319, %v295, 0
        %323 = vmatprep.subr.bf16.mxu0 0
        %324 = vmatpush1.bf16.msra.mxu0 %v315
        %325 = vmatprep.subr.bf16.mxu0 0
        %326 = vmatpush1.bf16.msra.mxu0 %v316
        %327 = vmatprep.subr.bf16.mxu0 0
        %328 = vmatpush1.bf16.msra.mxu0 0
        %329 = vmatprep.subr.bf16.mxu0 0
        %330 = vmatpush1.bf16.msra.mxu0 0
        %331 = vmatprep.subr.bf16.mxu0 0
        %332 = vmatpush1.bf16.msra.mxu0 0
        %333 = vmatprep.subr.bf16.mxu0 0
        %334 = vmatpush1.bf16.msra.mxu0 0
        %335 = vmatprep.subr.bf16.mxu0 0
        %336 = vmatpush1.bf16.msra.mxu0 0
        %337 = vmatprep.subr.bf16.mxu0 0
        %338 = vmatpush1.bf16.msra.mxu0 0
        %339 = vmatprep.subr.bf16.mxu0 0
        %340 = vmatpush1.bf16.msra.mxu0 0
        %341 = vmatprep.subr.bf16.mxu0 0
        %342 = vmatpush1.bf16.msra.mxu0 0
        %343 = vmatprep.subr.bf16.mxu0 0
        %344 = vmatpush1.bf16.msra.mxu0 0
        %345 = vmatprep.subr.bf16.mxu0 0
        %346 = vmatpush1.bf16.msra.mxu0 0
        %347 = vmatprep.subr.bf16.mxu0 0
        %348 = vmatpush1.bf16.msra.mxu0 0
        %349 = vmatprep.subr.bf16.mxu0 0
        %350 = vmatpush1.bf16.msra.mxu0 0
        %351 = vmatprep.subr.bf16.mxu0 0
        %352 = vmatpush1.bf16.msra.mxu0 0
        %353 = vmatprep.subr.bf16.mxu0 0
        %354 = vmatpush1.bf16.msra.mxu0 0
        %355 = vmatprep.mubr.bf16.mxu0 0
        %356 = vmatmul.mubr.bf16.gmra.mrb[0].mxu0 %v321
        %v357 = vpop.f32.mrb[0].mxu0
        %v358 = vadd.f32 %v305, %v357
        %v359 = vpop.f32.mrb[0].mxu0
        %v360 = vpop.f32.mrb[0].mxu0
        %v361 = vpop.f32.mrb[0].mxu0
        %362 = vdwg.mxu0
        %364 = vrot.lane.b32.xlu0 %v358, 120
        %v365 = vpop.permute.xlu0 %364
        %367 = vrot.lane.b32.xlu0 %v358, 112
        %v368 = vpop.permute.xlu0 %367
        %370 = vrot.lane.b32.xlu0 %v358, 104
        %v371 = vpop.permute.xlu0 %370
        %v373 = vcombine.low %v358, %v368
        %v374 = vcombine.high %v358, %v368
        %v376 = vunpack.c.l.s4 1983009808
        %v377 = vunpack.c.0.s8 %v376
        %v378 = vlaneseq
        %v379 = vshrl.u32 %v378, 7
        %v380 = vsub.s32 %v377, %v379
        %v381 = vrot.slane %v373, %v380
        %v383 = vunpack.c.l.s4 1983009808
        %v384 = vunpack.c.0.s8 %v383
        %v385 = vlaneseq
        %v386 = vshrl.u32 %v385, 7
        %v387 = vsub.s32 %v384, %v386
        %v388 = vrot.slane %v374, %v387
        %v389 = vcombine.low %v365, %v371
        %v390 = vcombine.high %v365, %v371
        %v392 = vunpack.c.l.s4 1983009808
        %v393 = vunpack.c.0.s8 %v392
        %v394 = vlaneseq
        %v395 = vshrl.u32 %v394, 7
        %v396 = vsub.s32 %v393, %v395
        %v397 = vrot.slane %v389, %v396
        %v399 = vunpack.c.l.s4 1983009808
        %v400 = vunpack.c.0.s8 %v399
        %v401 = vlaneseq
        %v402 = vshrl.u32 %v401, 7
        %v403 = vsub.s32 %v400, %v402
        %v404 = vrot.slane %v390, %v403
        %v405 = vcombine.low %v381, %v397
        %v406 = vcombine.high %v381, %v397
        %v408 = vunpack.c.l.s4 1934713408
        %v409 = vunpack.c.0.s8 %v408
        %v410 = vlaneseq
        %v411 = vshrl.u32 %v410, 7
        %v412 = vsub.s32 %v409, %v411
        %v413 = vrot.slane %v405, %v412
        %v415 = vunpack.c.l.s4 1934713408
        %v416 = vunpack.c.0.s8 %v415
        %v417 = vlaneseq
        %v418 = vshrl.u32 %v417, 7
        %v419 = vsub.s32 %v416, %v418
        %v420 = vrot.slane %v406, %v419
        %v421 = vcombine.low %v388, %v404
        %v422 = vcombine.high %v388, %v404
        %v424 = vunpack.c.l.s4 1934713408
        %v425 = vunpack.c.0.s8 %v424
        %v426 = vlaneseq
        %v427 = vshrl.u32 %v426, 7
        %v428 = vsub.s32 %v425, %v427
        %v429 = vrot.slane %v421, %v428
        %v431 = vunpack.c.l.s4 1934713408
        %v432 = vunpack.c.0.s8 %v431
        %v433 = vlaneseq
        %v434 = vshrl.u32 %v433, 7
        %v435 = vsub.s32 %v432, %v434
        %v436 = vrot.slane %v422, %v435
        %v437 = vcombine.high %v413, 0.0
        %v438 = vcombine.high %v420, 0.0
        %v439 = vcombine.high %v429, 0.0
        %v440 = vcombine.high %v436, 0.0
        %v441 = vcombine.low %v413, %v420
        %v443 = vunpack.c.l.s4 1983009808
        %v444 = vunpack.c.0.s8 %v443
        %v445 = vlaneseq
        %v446 = vshrl.u32 %v445, 7
        %v447 = vsub.s32 %v444, %v446
        %v448 = vrot.slane %v441, %v447
        %v449 = vcombine.low %v437, %v438
        %v451 = vunpack.c.l.s4 1983009808
        %v452 = vunpack.c.0.s8 %v451
        %v453 = vlaneseq
        %v454 = vshrl.u32 %v453, 7
        %v455 = vsub.s32 %v452, %v454
        %v456 = vrot.slane %v449, %v455
        %v457 = vcombine.low %v429, %v436
        %v459 = vunpack.c.l.s4 1983009808
        %v460 = vunpack.c.0.s8 %v459
        %v461 = vlaneseq
        %v462 = vshrl.u32 %v461, 7
        %v463 = vsub.s32 %v460, %v462
        %v464 = vrot.slane %v457, %v463
        %v465 = vcombine.low %v439, %v440
        %v467 = vunpack.c.l.s4 1983009808
        %v468 = vunpack.c.0.s8 %v467
        %v469 = vlaneseq
        %v470 = vshrl.u32 %v469, 7
        %v471 = vsub.s32 %v468, %v470
        %v472 = vrot.slane %v465, %v471
        %v473 = vcombine.low %v448, %v456
        %v474 = vcombine.high %v448, %v456
        %v476 = vunpack.c.l.s4 1934713408
        %v477 = vunpack.c.0.s8 %v476
        %v478 = vlaneseq
        %v479 = vshrl.u32 %v478, 7
        %v480 = vsub.s32 %v477, %v479
        %v481 = vrot.slane %v473, %v480
        %v483 = vunpack.c.l.s4 1934713408
        %v484 = vunpack.c.0.s8 %v483
        %v485 = vlaneseq
        %v486 = vshrl.u32 %v485, 7
        %v487 = vsub.s32 %v484, %v486
        %v488 = vrot.slane %v474, %v487
        %v489 = vcombine.low %v464, %v472
        %v490 = vcombine.high %v464, %v472
        %v492 = vunpack.c.l.s4 1934713408
        %v493 = vunpack.c.0.s8 %v492
        %v494 = vlaneseq
        %v495 = vshrl.u32 %v494, 7
        %v496 = vsub.s32 %v493, %v495
        %v497 = vrot.slane %v489, %v496
        %v499 = vunpack.c.l.s4 1934713408
        %v500 = vunpack.c.0.s8 %v499
        %v501 = vlaneseq
        %v502 = vshrl.u32 %v501, 7
        %v503 = vsub.s32 %v500, %v502
        %v504 = vrot.slane %v490, %v503
        %v505 = vcombine.low %v481, %v497
        %v506 = vcombine.high %v481, %v497
        %v507 = vcombine.low %v488, %v504
        %v508 = vcombine.high %v488, %v504
        %v509 = vpack.c.bf16 %v505, %v505
        %v510 = vpack.c.bf16 %v506, %v506
        %v511 = vpack.c.bf16 %v507, %v507
        %v512 = vpack.c.bf16 %v508, %v508
        %vm513 = vcmask 60416
        %514 = vst.msk [vmem:[%s279] sm:$0xf] %vm513, %v509
        %515 = vst.msk [vmem:[%s279 + $0x4] sm:$0xf] %vm513, %v510
        %516 = vst.msk [vmem:[%s279 + $0x8] sm:$0xf] %vm513, %v511
        %517 = vst.msk [vmem:[%s279 + $0xc] sm:$0xf] %vm513, %v512
        %518 = vrot.lane.b32.xlu0 %v358, 96
        %v519 = vpop.permute.xlu0 %518
        %520 = vrot.lane.b32.xlu0 %v365, 96
        %v521 = vpop.permute.xlu0 %520
        %522 = vrot.lane.b32.xlu0 %v368, 96
        %v523 = vpop.permute.xlu0 %522
        %524 = vrot.lane.b32.xlu0 %v371, 96
        %v525 = vpop.permute.xlu0 %524
        %v530 = vcombine.low %v519, %v523
        %v531 = vcombine.high %v519, %v523
        %v533 = vunpack.c.l.s4 1983009808
        %v534 = vunpack.c.0.s8 %v533
        %v535 = vlaneseq
        %v536 = vshrl.u32 %v535, 7
        %v537 = vsub.s32 %v534, %v536
        %v538 = vrot.slane %v530, %v537
        %v540 = vunpack.c.l.s4 1983009808
        %v541 = vunpack.c.0.s8 %v540
        %v542 = vlaneseq
        %v543 = vshrl.u32 %v542, 7
        %v544 = vsub.s32 %v541, %v543
        %v545 = vrot.slane %v531, %v544
        %v546 = vcombine.low %v521, %v525
        %v547 = vcombine.high %v521, %v525
        %v549 = vunpack.c.l.s4 1983009808
        %v550 = vunpack.c.0.s8 %v549
        %v551 = vlaneseq
        %v552 = vshrl.u32 %v551, 7
        %v553 = vsub.s32 %v550, %v552
        %v554 = vrot.slane %v546, %v553
        %v556 = vunpack.c.l.s4 1983009808
        %v557 = vunpack.c.0.s8 %v556
        %v558 = vlaneseq
        %v559 = vshrl.u32 %v558, 7
        %v560 = vsub.s32 %v557, %v559
        %v561 = vrot.slane %v547, %v560
        %v562 = vcombine.low %v538, %v554
        %v563 = vcombine.high %v538, %v554
        %v565 = vunpack.c.l.s4 1934713408
        %v566 = vunpack.c.0.s8 %v565
        %v567 = vlaneseq
        %v568 = vshrl.u32 %v567, 7
        %v569 = vsub.s32 %v566, %v568
        %v570 = vrot.slane %v562, %v569
        %v572 = vunpack.c.l.s4 1934713408
        %v573 = vunpack.c.0.s8 %v572
        %v574 = vlaneseq
        %v575 = vshrl.u32 %v574, 7
        %v576 = vsub.s32 %v573, %v575
        %v577 = vrot.slane %v563, %v576
        %v578 = vcombine.low %v545, %v561
        %v579 = vcombine.high %v545, %v561
        %v581 = vunpack.c.l.s4 1934713408
        %v582 = vunpack.c.0.s8 %v581
        %v583 = vlaneseq
        %v584 = vshrl.u32 %v583, 7
        %v585 = vsub.s32 %v582, %v584
        %v586 = vrot.slane %v578, %v585
        %v588 = vunpack.c.l.s4 1934713408
        %v589 = vunpack.c.0.s8 %v588
        %v590 = vlaneseq
        %v591 = vshrl.u32 %v590, 7
        %v592 = vsub.s32 %v589, %v591
        %v593 = vrot.slane %v579, %v592
        %v594 = vcombine.high %v570, 0.0
        %v595 = vcombine.high %v577, 0.0
        %v596 = vcombine.high %v586, 0.0
        %v597 = vcombine.high %v593, 0.0
        %v598 = vcombine.low %v570, %v577
        %v600 = vunpack.c.l.s4 1983009808
        %v601 = vunpack.c.0.s8 %v600
        %v602 = vlaneseq
        %v603 = vshrl.u32 %v602, 7
        %v604 = vsub.s32 %v601, %v603
        %v605 = vrot.slane %v598, %v604
        %v606 = vcombine.low %v594, %v595
        %v608 = vunpack.c.l.s4 1983009808
        %v609 = vunpack.c.0.s8 %v608
        %v610 = vlaneseq
        %v611 = vshrl.u32 %v610, 7
        %v612 = vsub.s32 %v609, %v611
        %v613 = vrot.slane %v606, %v612
        %v614 = vcombine.low %v586, %v593
        %v616 = vunpack.c.l.s4 1983009808
        %v617 = vunpack.c.0.s8 %v616
        %v618 = vlaneseq
        %v619 = vshrl.u32 %v618, 7
        %v620 = vsub.s32 %v617, %v619
        %v621 = vrot.slane %v614, %v620
        %v622 = vcombine.low %v596, %v597
        %v624 = vunpack.c.l.s4 1983009808
        %v625 = vunpack.c.0.s8 %v624
        %v626 = vlaneseq
        %v627 = vshrl.u32 %v626, 7
        %v628 = vsub.s32 %v625, %v627
        %v629 = vrot.slane %v622, %v628
        %v630 = vcombine.low %v605, %v613
        %v631 = vcombine.high %v605, %v613
        %v633 = vunpack.c.l.s4 1934713408
        %v634 = vunpack.c.0.s8 %v633
        %v635 = vlaneseq
        %v636 = vshrl.u32 %v635, 7
        %v637 = vsub.s32 %v634, %v636
        %v638 = vrot.slane %v630, %v637
        %v640 = vunpack.c.l.s4 1934713408
        %v641 = vunpack.c.0.s8 %v640
        %v642 = vlaneseq
        %v643 = vshrl.u32 %v642, 7
        %v644 = vsub.s32 %v641, %v643
        %v645 = vrot.slane %v631, %v644
        %v646 = vcombine.low %v621, %v629
        %v647 = vcombine.high %v621, %v629
        %v649 = vunpack.c.l.s4 1934713408
        %v650 = vunpack.c.0.s8 %v649
        %v651 = vlaneseq
        %v652 = vshrl.u32 %v651, 7
        %v653 = vsub.s32 %v650, %v652
        %v654 = vrot.slane %v646, %v653
        %v656 = vunpack.c.l.s4 1934713408
        %v657 = vunpack.c.0.s8 %v656
        %v658 = vlaneseq
        %v659 = vshrl.u32 %v658, 7
        %v660 = vsub.s32 %v657, %v659
        %v661 = vrot.slane %v647, %v660
        %v662 = vcombine.low %v638, %v654
        %v663 = vcombine.high %v638, %v654
        %v664 = vcombine.low %v645, %v661
        %v665 = vcombine.high %v645, %v661
        %v666 = vpack.c.bf16 %v662, %v662
        %v667 = vpack.c.bf16 %v663, %v663
        %v668 = vpack.c.bf16 %v664, %v664
        %v669 = vpack.c.bf16 %v665, %v665
        %670 = vst.msk [vmem:[%s286] sm:$0xf] %vm513, %v666
        %671 = vst.msk [vmem:[%s286 + $0x4] sm:$0xf] %vm513, %v667
        %672 = vst.msk [vmem:[%s286 + $0x8] sm:$0xf] %vm513, %v668
        %673 = vst.msk [vmem:[%s286 + $0xc] sm:$0xf] %vm513, %v669
        %674 = vrot.lane.b32.xlu0 %v358, 64
        %v675 = vpop.permute.xlu0 %674
        %676 = vrot.lane.b32.xlu0 %v365, 64
        %v677 = vpop.permute.xlu0 %676
        %678 = vrot.lane.b32.xlu0 %v368, 64
        %v679 = vpop.permute.xlu0 %678
        %680 = vrot.lane.b32.xlu0 %v371, 64
        %v681 = vpop.permute.xlu0 %680
        %v686 = vcombine.low %v675, %v679
        %v687 = vcombine.high %v675, %v679
        %v689 = vunpack.c.l.s4 1983009808
        %v690 = vunpack.c.0.s8 %v689
        %v691 = vlaneseq
        %v692 = vshrl.u32 %v691, 7
        %v693 = vsub.s32 %v690, %v692
        %v694 = vrot.slane %v686, %v693
        %v696 = vunpack.c.l.s4 1983009808
        %v697 = vunpack.c.0.s8 %v696
        %v698 = vlaneseq
        %v699 = vshrl.u32 %v698, 7
        %v700 = vsub.s32 %v697, %v699
        %v701 = vrot.slane %v687, %v700
        %v702 = vcombine.low %v677, %v681
        %v703 = vcombine.high %v677, %v681
        %v705 = vunpack.c.l.s4 1983009808
        %v706 = vunpack.c.0.s8 %v705
        %v707 = vlaneseq
        %v708 = vshrl.u32 %v707, 7
        %v709 = vsub.s32 %v706, %v708
        %v710 = vrot.slane %v702, %v709
        %v712 = vunpack.c.l.s4 1983009808
        %v713 = vunpack.c.0.s8 %v712
        %v714 = vlaneseq
        %v715 = vshrl.u32 %v714, 7
        %v716 = vsub.s32 %v713, %v715
        %v717 = vrot.slane %v703, %v716
        %v718 = vcombine.low %v694, %v710
        %v719 = vcombine.high %v694, %v710
        %v721 = vunpack.c.l.s4 1934713408
        %v722 = vunpack.c.0.s8 %v721
        %v723 = vlaneseq
        %v724 = vshrl.u32 %v723, 7
        %v725 = vsub.s32 %v722, %v724
        %v726 = vrot.slane %v718, %v725
        %v728 = vunpack.c.l.s4 1934713408
        %v729 = vunpack.c.0.s8 %v728
        %v730 = vlaneseq
        %v731 = vshrl.u32 %v730, 7
        %v732 = vsub.s32 %v729, %v731
        %v733 = vrot.slane %v719, %v732
        %v734 = vcombine.low %v701, %v717
        %v735 = vcombine.high %v701, %v717
        %v737 = vunpack.c.l.s4 1934713408
        %v738 = vunpack.c.0.s8 %v737
        %v739 = vlaneseq
        %v740 = vshrl.u32 %v739, 7
        %v741 = vsub.s32 %v738, %v740
        %v742 = vrot.slane %v734, %v741
        %v744 = vunpack.c.l.s4 1934713408
        %v745 = vunpack.c.0.s8 %v744
        %v746 = vlaneseq
        %v747 = vshrl.u32 %v746, 7
        %v748 = vsub.s32 %v745, %v747
        %v749 = vrot.slane %v735, %v748
        %v750 = vcombine.high %v726, 0.0
        %v751 = vcombine.high %v733, 0.0
        %v752 = vcombine.high %v742, 0.0
        %v753 = vcombine.high %v749, 0.0
        %v754 = vcombine.low %v726, %v733
        %v756 = vunpack.c.l.s4 1983009808
        %v757 = vunpack.c.0.s8 %v756
        %v758 = vlaneseq
        %v759 = vshrl.u32 %v758, 7
        %v760 = vsub.s32 %v757, %v759
        %v761 = vrot.slane %v754, %v760
        %v762 = vcombine.low %v750, %v751
        %v764 = vunpack.c.l.s4 1983009808
        %v765 = vunpack.c.0.s8 %v764
        %v766 = vlaneseq
        %v767 = vshrl.u32 %v766, 7
        %v768 = vsub.s32 %v765, %v767
        %v769 = vrot.slane %v762, %v768
        %v770 = vcombine.low %v742, %v749
        %v772 = vunpack.c.l.s4 1983009808
        %v773 = vunpack.c.0.s8 %v772
        %v774 = vlaneseq
        %v775 = vshrl.u32 %v774, 7
        %v776 = vsub.s32 %v773, %v775
        %v777 = vrot.slane %v770, %v776
        %v778 = vcombine.low %v752, %v753
        %v780 = vunpack.c.l.s4 1983009808
        %v781 = vunpack.c.0.s8 %v780
        %v782 = vlaneseq
        %v783 = vshrl.u32 %v782, 7
        %v784 = vsub.s32 %v781, %v783
        %v785 = vrot.slane %v778, %v784
        %v786 = vcombine.low %v761, %v769
        %v787 = vcombine.high %v761, %v769
        %v789 = vunpack.c.l.s4 1934713408
        %v790 = vunpack.c.0.s8 %v789
        %v791 = vlaneseq
        %v792 = vshrl.u32 %v791, 7
        %v793 = vsub.s32 %v790, %v792
        %v794 = vrot.slane %v786, %v793
        %v796 = vunpack.c.l.s4 1934713408
        %v797 = vunpack.c.0.s8 %v796
        %v798 = vlaneseq
        %v799 = vshrl.u32 %v798, 7
        %v800 = vsub.s32 %v797, %v799
        %v801 = vrot.slane %v787, %v800
        %v802 = vcombine.low %v777, %v785
        %v803 = vcombine.high %v777, %v785
        %v805 = vunpack.c.l.s4 1934713408
        %v806 = vunpack.c.0.s8 %v805
        %v807 = vlaneseq
        %v808 = vshrl.u32 %v807, 7
        %v809 = vsub.s32 %v806, %v808
        %v810 = vrot.slane %v802, %v809
        %v812 = vunpack.c.l.s4 1934713408
        %v813 = vunpack.c.0.s8 %v812
        %v814 = vlaneseq
        %v815 = vshrl.u32 %v814, 7
        %v816 = vsub.s32 %v813, %v815
        %v817 = vrot.slane %v803, %v816
        %v818 = vcombine.low %v794, %v810
        %v819 = vcombine.high %v794, %v810
        %v820 = vcombine.low %v801, %v817
        %v821 = vcombine.high %v801, %v817
        %v822 = vpack.c.bf16 %v818, %v818
        %v823 = vpack.c.bf16 %v819, %v819
        %v824 = vpack.c.bf16 %v820, %v820
        %v825 = vpack.c.bf16 %v821, %v821
        %826 = vst.msk [vmem:[%s293] sm:$0xf] %vm513, %v822
        %827 = vst.msk [vmem:[%s293 + $0x4] sm:$0xf] %vm513, %v823
        %828 = vst.msk [vmem:[%s293 + $0x8] sm:$0xf] %vm513, %v824
        %829 = vst.msk [vmem:[%s293 + $0xc] sm:$0xf] %vm513, %v825
        %s830 = sand.u32 %s119, 1
        %s831 = scalar_lea.sflag [#allocation4], %s830
        %s832 = sand.u32 %s119, 1
        %s833 = smul.addr %s832, 16
        %s834 = scalar_lea.vmem [#allocation7], %s833
        %s835 = sand.u32 %s27, 1
        %s836 = scalar_lea.sflag [#allocation9], %s835
        %s837 = sand.u32 %s147, 1
        %s838 = smul.addr %s837, 16
        %s839 = scalar_lea.vmem [#allocation8], %s838
        %s840 = sand.u32 %s27, 1
        %s841 = scalar_lea.sflag [#allocation9], %s840
        %s842 = sand.u32 %s175, 1
        %s843 = smul.addr %s842, 16
        %s844 = scalar_lea.vmem [#allocation10], %s843
        // Predicated region
        $region41: #{tpu_custom_call.1} parent=31 // pred_check
          %p845 = pneg %p129
        $region42: #{tpu_custom_call.1} parent=31 // pred_check_branch
          %847 = sbr.rel (%p845) target = $region44
        $region43: #{tpu_custom_call.1} parent=31 // pred_region
          %s849 = ssub.s32 256, 256
          %850 = vsyncadd %s831, %s849
          %s851 = smul.addr %s31, 4
          %s852 = sadd.s32 %s32, %s851
          %s853 = smul.addr %s852, 64
          %s854 = scalar_lea.hbm %s3, %s853
          %s855 = sshll.u32 %s834, 4
          %s856 = int_to_ptr.vmem [resolvable:$true] %s855
          %861 = dma.vmem_to_hbm [thread:$0]  %s856, 256, %s854, %s831, 64, 64, 4
        $region44: #{tpu_custom_call.1} parent=31 // pred_fallthru
          _
        // Predicated region
        $region45: #{tpu_custom_call.1} parent=31 // pred_check
          %p862 = pneg %p157
        $region46: #{tpu_custom_call.1} parent=31 // pred_check_branch
          %864 = sbr.rel (%p862) target = $region48
        $region47: #{tpu_custom_call.1} parent=31 // pred_region
          %s866 = ssub.s32 256, 256
          %867 = vsyncadd %s836, %s866
          %s868 = smul.addr %s31, 4
          %s869 = sadd.s32 %s32, %s868
          %s870 = smul.addr %s869, 64
          %s871 = scalar_lea.hbm %s4, %s870
          %s872 = sshll.u32 %s839, 4
          %s873 = int_to_ptr.vmem [resolvable:$true] %s872
          %878 = dma.vmem_to_hbm [thread:$0]  %s873, 256, %s871, %s836, 64, 64, 4
        $region48: #{tpu_custom_call.1} parent=31 // pred_fallthru
          _
        // Predicated region
        $region49: #{tpu_custom_call.1} parent=31 // pred_check
          %p879 = pneg %p185
        $region50: #{tpu_custom_call.1} parent=31 // pred_check_branch
          %881 = sbr.rel (%p879) target = $region52
        $region51: #{tpu_custom_call.1} parent=31 // pred_region
          %s883 = ssub.s32 256, 256
          %884 = vsyncadd %s841, %s883
          %s885 = smul.addr %s31, 4
          %s886 = sadd.s32 %s32, %s885
          %s887 = smul.addr %s886, 64
          %s888 = scalar_lea.hbm %s5, %s887
          %s889 = sshll.u32 %s844, 4
          %s890 = int_to_ptr.vmem [resolvable:$true] %s889
          %895 = dma.vmem_to_hbm [thread:$0]  %s890, 256, %s888, %s841, 64, 64, 4
        $region52: #{tpu_custom_call.1} parent=31 // pred_fallthru
          _
      $region32: #{tpu_custom_call.1} parent=5 // pred_fallthru
        _
      %p896 = scmp.le.s32.totalorder 2, %s22
      // Predicated region
      $region53: #{tpu_custom_call.1} parent=5 // pred_check
        %p897 = pneg %p896
      $region54: #{tpu_custom_call.1} parent=5 // pred_check_branch
        %899 = sbr.rel (%p897) target = $region56
      $region55: #{tpu_custom_call.1} parent=5 // pred_region
        %s900 = ssub.s32 %s22, 2
        // Predicated region
        $region57: #{tpu_custom_call.1} parent=55 // pred_check
          %p901 = pneg %p135
        $region58: #{tpu_custom_call.1} parent=55 // pred_check_branch
          %903 = sbr.rel (%p901) target = $region60
        $region59: #{tpu_custom_call.1} parent=55 // pred_region
          %s904 = sand.u32 %s120, 1
          %s905 = scalar_lea.sflag [#allocation4], %s904
          %s906 = sand.u32 %s120, 1
          %s907 = smul.addr %s906, 16
          %s908 = scalar_lea.vmem [#allocation7], %s907
          %909 = dma.done %s905, 256
        $region60: #{tpu_custom_call.1} parent=55 // pred_fallthru
          _
        // Predicated region
        $region61: #{tpu_custom_call.1} parent=55 // pred_check
          %p910 = pneg %p163
        $region62: #{tpu_custom_call.1} parent=55 // pred_check_branch
          %912 = sbr.rel (%p910) target = $region64
        $region63: #{tpu_custom_call.1} parent=55 // pred_region
          %s913 = sand.u32 %s28, 1
          %s914 = scalar_lea.sflag [#allocation9], %s913
          %s915 = sand.u32 %s148, 1
          %s916 = smul.addr %s915, 16
          %s917 = scalar_lea.vmem [#allocation8], %s916
          %918 = dma.done %s914, 256
        $region64: #{tpu_custom_call.1} parent=55 // pred_fallthru
          _
        // Predicated region
        $region65: #{tpu_custom_call.1} parent=55 // pred_check
          %p919 = pneg %p191
        $region66: #{tpu_custom_call.1} parent=55 // pred_check_branch
          %921 = sbr.rel (%p919) target = $region68
        $region67: #{tpu_custom_call.1} parent=55 // pred_region
          %s922 = sand.u32 %s28, 1
          %s923 = scalar_lea.sflag [#allocation9], %s922
          %s924 = sand.u32 %s176, 1
          %s925 = smul.addr %s924, 16
          %s926 = scalar_lea.vmem [#allocation10], %s925
          %927 = dma.done %s923, 256
        $region68: #{tpu_custom_call.1} parent=55 // pred_fallthru
          _
      $region56: #{tpu_custom_call.1} parent=5 // pred_fallthru
        _
    $region6: #{tpu_custom_call.1} parent=1 // loop_footer
      %s26 = sadd.s32 1, %s22
    $region7: #{tpu_custom_call.1} parent=1 // loop_footer_branch
      %21 = sbr.rel target = $region3
    $region8: #{tpu_custom_call.1} parent=1 // loop_exit
      _
    %928 = vsyncpa [#allocation3], 1
    %s929 = scalar_lea.sflag [#allocation3], 1
    %930 = vsyncpa %s929, 1
    %931 = vsyncpa [#allocation6], 1
    %932 = vsyncpa [#allocation4], 1
    %s933 = scalar_lea.sflag [#allocation4], 1
    %934 = vsyncpa %s933, 1
    %935 = vsyncpa [#allocation9], 1
    %s936 = scalar_lea.sflag [#allocation9], 1
    %937 = vsyncpa %s936, 1

</llo_original>
